<compile_context>
chip_gen: v7x
topology: tpu7x:2x2x1
jax: 0.10.0
libtpu: 0.0.40
codegen_flags: <defaults>
</compile_context>

<pallas_src>
import numpy as np
import jax
import jax.numpy as jnp
from jax.experimental import pallas as pl
from jax.experimental.pallas import tpu as pltpu

# ---------------- scaled-down hyperparameters (same structure as the module) --
N           = 2      # batch
L_SEQ       = 16     # sentence length
L_ASP       = 8      # aspect length
EMBED_NUM   = 50
A_EMBED_NUM = 20
D           = 32     # embed_dim == aspect_embed_dim
CO          = 16     # Co
L_HID       = 32     # L (aspect conv output channels)
KS          = (3, 4, 5)
C           = 3      # num classes
C_PAD       = 128    # lane-dense padded width used for every matmul output

NK       = len(KS)
KMIN     = min(KS)
KMAX     = max(KS)
K_ASP    = 3                       # convs3 kernel size
T_ASP    = L_ASP                   # convs3 has padding=1 -> out length == L_ASP
T_TILE   = 16                      # time positions evaluated (>= L_SEQ-KMIN+1, mult of 8)
L_PAD    = T_TILE + KMAX - 1       # zero-padded sentence length fed to the kernel (20)
GATE_W   = 64                      # conv1 half width (>= NK*CO, half a vreg)

assert NK * CO <= GATE_W and GATE_W + NK * CO <= C_PAD and L_HID <= C_PAD

# Row offsets of the fused weight slab (Python ints -> no captured constants).
ROW_W3    = 0
ROW_WCONV = ROW_W3 + K_ASP * D          # 96
ROW_WFA   = ROW_WCONV + KMAX * D        # 256
ROW_WFC   = ROW_WFA + C_PAD             # 384
ROW_END   = ROW_WFC + GATE_W            # 448


# ------------------------------- Pallas kernel --------------------------------
def cnn_gate_aspect_kernel(
    feat_ref,    # (nb, L_PAD, D)       bf16 sentence embeddings (time zero-padded)
    asp_ref,     # (nb, L_ASP + 2, D)   bf16 aspect embeddings (padding=1 applied)
    wslab_ref,   # (ROW_END, C_PAD)     bf16 fused weight slab
    bslab_ref,   # (8, C_PAD)           f32 bias slab (rows: b3, bfa, bconv, bfc)
    mask_ref,    # (T_TILE, GATE_W)     f32 additive time-validity mask (0 / -1e30)
    out_ref,     # (nb, C_PAD)          f32 padded logits
):
    nb = feat_ref.shape[0]

    # Static, tile-aligned views into the fused slabs.
    w3    = wslab_ref[ROW_W3:ROW_WCONV, :]       # (K_ASP*D, 128)
    wconv = wslab_ref[ROW_WCONV:ROW_WFA, :]      # (KMAX*D, 128)
    wfa   = wslab_ref[ROW_WFA:ROW_WFC, :]        # (128, 128)  fc_aspect, conv2-aligned
    wfc   = wslab_ref[ROW_WFC:ROW_END, :]        # (GATE_W, 128)
    b3    = bslab_ref[0:1, :]
    bfa   = bslab_ref[1:2, :]
    bconv = bslab_ref[2:3, :]
    bfc   = bslab_ref[3:4, :]

    # ---- aspect branch: convs3 (im2col, one matmul) -> relu -> max over time -
    asp = asp_ref[...]                                              # (nb, L_ASP+2, D)
    a_win = jnp.concatenate(
        [asp[:, k:k + T_ASP, :] for k in range(K_ASP)], axis=-1)    # (nb, T_ASP, 3*D)
    a_win = a_win.reshape(nb * T_ASP, K_ASP * D)
    a = jnp.dot(a_win, w3, preferred_element_type=jnp.float32) + b3
    a = jnp.maximum(a, 0.0).reshape(nb, T_ASP, C_PAD)
    aspect_vec = jnp.max(a, axis=1)                                 # (nb, 128), pad cols = 0

    # fc_aspect replicated per kernel size at the conv2 column offsets, so the
    # result can be added straight onto the fused conv output (no jnp.tile).
    asp_bias = jnp.dot(aspect_vec.astype(jnp.bfloat16), wfa,
                       preferred_element_type=jnp.float32) + bfa    # (nb, 128)

    # ---- fused gated conv: all kernel sizes + conv1/conv2 in ONE matmul ------
    feat = feat_ref[...]                                            # (nb, L_PAD, D)
    f_win = jnp.concatenate(
        [feat[:, k:k + T_TILE, :] for k in range(KMAX)], axis=-1)   # (nb, T_TILE, KMAX*D)
    f_win = f_win.reshape(nb * T_TILE, KMAX * D)                    # layout-free (16 | 8)
    conv_all = jnp.dot(f_win, wconv, preferred_element_type=jnp.float32) + bconv
    pre = conv_all.reshape(nb, T_TILE, C_PAD) + asp_bias[:, None, :]

    gate_x = jnp.tanh(pre[:, :, :GATE_W])                           # tanh(conv1), pad cols -> 0
    gate_y = jnp.maximum(pre[:, :, GATE_W:], 0.0)                   # relu(conv2 + fc_aspect)
    gated = gate_x * gate_y + mask_ref[...]                         # additive -1e30 on invalid t
    pooled = jnp.max(gated, axis=1)                                 # (nb, GATE_W)

    # dropout(0.2) -> identity (eval-mode forward)
    logits = jnp.dot(pooled.astype(jnp.bfloat16), wfc,
                     preferred_element_type=jnp.float32) + bfc      # (nb, 128)
    out_ref[...] = logits.astype(out_ref.dtype)


# --------------------------- host-side weight packing -------------------------
def _im2col_weight(w_pt, kmax):
    """PyTorch Conv1d weight (C_out, D, K) -> im2col layout (kmax*D, C_out)."""
    c_out, d, k = w_pt.shape
    packed = jnp.transpose(w_pt, (2, 1, 0)).reshape(k * d, c_out)
    return jnp.pad(packed, ((0, (kmax - k) * d), (0, 0)))


def pack_params(params):
    f32 = jnp.float32

    # convs3 -> (K_ASP*D, 128), real cols [0:L_HID]
    w3 = jnp.pad(_im2col_weight(params["w3"], K_ASP), ((0, 0), (0, C_PAD - L_HID)))

    # conv1 (3 kernel sizes) at cols [0:NK*CO], conv2 at cols [GATE_W:GATE_W+NK*CO]
    c1 = jnp.concatenate([_im2col_weight(w, KMAX) for w in params["w1"]], axis=1)
    c2 = jnp.concatenate([_im2col_weight(w, KMAX) for w in params["w2"]], axis=1)
    wconv = jnp.zeros((KMAX * D, C_PAD), f32)
    wconv = wconv.at[:, 0:NK * CO].set(c1).at[:, GATE_W:GATE_W + NK * CO].set(c2)

    # fc_aspect replicated per kernel size, aligned with the conv2 half.
    wfa = jnp.zeros((C_PAD, C_PAD), f32)
    wfa = wfa.at[0:L_HID, GATE_W:GATE_W + NK * CO].set(
        jnp.tile(params["w_fc_aspect"].T, (1, NK)))

    # fc1 -> (GATE_W, 128), real block rows [0:NK*CO], cols [0:C]
    wfc = jnp.zeros((GATE_W, C_PAD), f32)
    wfc = wfc.at[0:NK * CO, 0:C].set(params["w_fc1"].T)

    wslab = jnp.concatenate([w3, wconv, wfa, wfc], axis=0).astype(jnp.bfloat16)
    assert wslab.shape == (ROW_END, C_PAD)

    bslab = jnp.zeros((8, C_PAD), f32)
    bslab = bslab.at[0, 0:L_HID].set(params["b3"])
    bslab = bslab.at[1, GATE_W:GATE_W + NK * CO].set(jnp.tile(params["b_fc_aspect"], NK))
    bslab = bslab.at[2, 0:NK * CO].set(jnp.concatenate(params["b1"]))
    bslab = bslab.at[2, GATE_W:GATE_W + NK * CO].set(jnp.concatenate(params["b2"]))
    bslab = bslab.at[3, 0:C].set(params["b_fc1"])

    # Time-validity mask, precomputed (compile-time constant passed as input).
    mask = np.zeros((T_TILE, GATE_W), np.float32)
    for g, k in enumerate(KS):
        mask[L_SEQ - k + 1:, g * CO:(g + 1) * CO] = -1e30
    return wslab, bslab, jnp.asarray(mask)


# --------------------------------- wrapper ------------------------------------
def cnn_gate_aspect_forward(feature_ids, aspect_ids, params, *, nb=None):
    """feature_ids: (N, L_SEQ) int32, aspect_ids: (N, L_ASP) int32 -> (N, C)."""
    n = feature_ids.shape[0]
    if nb is None:
        # Largest divisor of n up to 16 -> nb*T_TILE rows per fused matmul.
        # (On v7x keep nb <= n/2 when n is large so both TensorCores get work.)
        nb = next(d for d in (16, 8, 4, 2, 1) if d <= n and n % d == 0)
    assert n % nb == 0

    # Embedding gathers stay in XLA glue at toy size; bf16 halves DMA bytes.
    # TODO(synk): fuse the gathers into the kernel (SMEM ids + pl.Element row
    # gather) if vocab/seq sizes grow enough to matter on v5e-class HBM.
    feat = params["embed"][feature_ids].astype(jnp.bfloat16)          # (N, L_SEQ, D)
    feat = jnp.pad(feat, ((0, 0), (0, L_PAD - L_SEQ), (0, 0)))        # time-pad for KMAX windows
    asp = params["aspect_embed"][aspect_ids].astype(jnp.bfloat16)     # (N, L_ASP, D)
    asp = jnp.pad(asp, ((0, 0), (1, 1), (0, 0)))                      # convs3 padding=1

    wslab, bslab, mask = pack_params(params)

    act_map = lambda i: (i, 0, 0)
    w_map = lambda i: (0, 0)
    out = pl.pallas_call(
        cnn_gate_aspect_kernel,
        out_shape=jax.ShapeDtypeStruct((n, C_PAD), jnp.float32),
        grid=(n // nb,),
        in_specs=[
            pl.BlockSpec((nb, L_PAD, D), act_map),
            pl.BlockSpec((nb, L_ASP + 2, D), act_map),
            pl.BlockSpec(wslab.shape, w_map),
            pl.BlockSpec(bslab.shape, w_map),
            pl.BlockSpec(mask.shape, w_map),
        ],
        out_specs=pl.BlockSpec((nb, C_PAD), lambda i: (i, 0)),
        compiler_params=pltpu.CompilerParams(
            dimension_semantics=("parallel",),
            vmem_limit_bytes=32 * 1024 * 1024,
        ),
    )(feat, asp, wslab, bslab, mask)

    return out[:, :C]


# ------------------------------ pure-JAX reference ----------------------------
def _conv_valid_ref(x, w_pt, b):
    """x: (N, T_in, D); w_pt: (C_out, D, K) PyTorch layout; b: (C_out,)."""
    c_out, _, k = w_pt.shape
    t_out = x.shape[1] - k + 1
    acc = jnp.zeros((x.shape[0], t_out, c_out), jnp.float32)
    for kk in range(k):
        acc = acc + jnp.einsum("ntd,cd->ntc", x[:, kk:kk + t_out, :], w_pt[:, :, kk])
    return acc + b.reshape(1, 1, c_out)


def _reference_forward(feature_ids, aspect_ids, params):
    feat = params["embed"][feature_ids].astype(jnp.float32)
    asp = params["aspect_embed"][aspect_ids].astype(jnp.float32)
    asp_pad = jnp.pad(asp, ((0, 0), (1, 1), (0, 0)))

    a = jnp.maximum(_conv_valid_ref(asp_pad, params["w3"], params["b3"]), 0.0)
    aspect_vec = jnp.max(a, axis=1)
    asp_fc = aspect_vec @ params["w_fc_aspect"].T + params["b_fc_aspect"]

    pooled = []
    for i in range(NK):
        x = jnp.tanh(_conv_valid_ref(feat, params["w1"][i], params["b1"][i]))
        y = jnp.maximum(_conv_valid_ref(feat, params["w2"][i], params["b2"][i])
                        + asp_fc[:, None, :], 0.0)
        pooled.append(jnp.max(x * y, axis=1))
    cat = jnp.concatenate(pooled, axis=1)
    return cat @ params["w_fc1"].T + params["b_fc1"]


# --------------------------------- params -------------------------------------
def init_params(key):
    keys = jax.random.split(key, 32)
    it = iter(keys)

    def rnd(shape, scale=0.1):
        return (scale * jax.random.normal(next(it), shape)).astype(jnp.float32)

    return {
        "embed": rnd((EMBED_NUM, D), 1.0),
        "aspect_embed": rnd((A_EMBED_NUM, D), 1.0),
        # convs3: Conv1d(D, L_HID, 3, padding=1): weight (L_HID, D, 3)
        "w3": rnd((L_HID, D, K_ASP)),
        "b3": rnd((L_HID,)),
        # convs1 / convs2: Conv1d(D, CO, K): weight (CO, D, K)
        "w1": [rnd((CO, D, k)) for k in KS],
        "b1": [rnd((CO,)) for _ in KS],
        "w2": [rnd((CO, D, k)) for k in KS],
        "b2": [rnd((CO,)) for _ in KS],
        # fc_aspect: Linear(L_HID, CO)
        "w_fc_aspect": rnd((CO, L_HID)),
        "b_fc_aspect": rnd((CO,)),
        # fc1: Linear(len(Ks)*CO, C)
        "w_fc1": rnd((C, NK * CO)),
        "b_fc1": rnd((C,)),
    }


if __name__ == "__main__":
    key = jax.random.PRNGKey(0)
    k_params, k_feat, k_asp = jax.random.split(key, 3)

    params = init_params(k_params)
    feature_ids = jax.random.randint(k_feat, (N, L_SEQ), 0, EMBED_NUM, dtype=jnp.int32)
    aspect_ids = jax.random.randint(k_asp, (N, L_ASP), 0, A_EMBED_NUM, dtype=jnp.int32)

    fwd = jax.jit(lambda f, a: cnn_gate_aspect_forward(f, a, params))
    logits = jax.block_until_ready(fwd(feature_ids, aspect_ids))

    ref = _reference_forward(feature_ids, aspect_ids, params)
    assert logits.shape == (N, C)
    max_err = float(jnp.max(jnp.abs(logits - ref)))
    # bf16 matmul operands with f32 accumulation -> loosened tolerance vs f32 ref.
    assert jnp.allclose(logits, ref, atol=5e-2, rtol=5e-2), f"max abs err = {max_err}"

    print("KERNEL_OK")
</pallas_src>

<mosaic_0001>
module attributes {stable_mosaic.version = 11 : i64} {
  func.func @cnn_gate_aspect_kernel(%arg0: i32, %arg1: memref<2x20x32xbf16, #tpu.memory_space<vmem>>, %arg2: memref<2x10x32xbf16, #tpu.memory_space<vmem>>, %arg3: memref<448x128xbf16, #tpu.memory_space<vmem>>, %arg4: memref<8x128xf32, #tpu.memory_space<vmem>>, %arg5: memref<16x64xf32, #tpu.memory_space<vmem>>, %arg6: memref<2x128xf32, #tpu.memory_space<vmem>>) attributes {dimension_semantics = [#tpu.dimension_semantics<parallel>], iteration_bounds = array<i64: 1>, scalar_prefetch = 0 : i64, scratch_operands = 0 : i64, tpu.core_type = #tpu.core_type<tc>, window_params = [{transform_indices = @transform_0, window_bounds = array<i64: 2, 20, 32>}, {transform_indices = @transform_1, window_bounds = array<i64: 2, 10, 32>}, {pipeline_mode = #tpu.pipeline_mode<synchronous>, transform_indices = @transform_2, window_bounds = array<i64: 448, 128>}, {pipeline_mode = #tpu.pipeline_mode<synchronous>, transform_indices = @transform_3, window_bounds = array<i64: 8, 128>}, {pipeline_mode = #tpu.pipeline_mode<synchronous>, transform_indices = @transform_4, window_bounds = array<i64: 16, 64>}, {transform_indices = @transform_5, window_bounds = array<i64: 2, 128>}]} {
    %c0 = arith.constant 0 : index
    %c0_0 = arith.constant 0 : index
    %0 = vector.load %arg3[%c0, %c0_0] : memref<448x128xbf16, #tpu.memory_space<vmem>>, vector<96x128xbf16>
    %c96 = arith.constant 96 : index
    %c0_1 = arith.constant 0 : index
    %1 = vector.load %arg3[%c96, %c0_1] : memref<448x128xbf16, #tpu.memory_space<vmem>>, vector<160x128xbf16>
    %c256 = arith.constant 256 : index
    %c0_2 = arith.constant 0 : index
    %2 = vector.load %arg3[%c256, %c0_2] : memref<448x128xbf16, #tpu.memory_space<vmem>>, vector<128x128xbf16>
    %c384 = arith.constant 384 : index
    %c0_3 = arith.constant 0 : index
    %3 = vector.load %arg3[%c384, %c0_3] : memref<448x128xbf16, #tpu.memory_space<vmem>>, vector<64x128xbf16>
    %c0_4 = arith.constant 0 : index
    %c0_5 = arith.constant 0 : index
    %4 = vector.load %arg4[%c0_4, %c0_5] : memref<8x128xf32, #tpu.memory_space<vmem>>, vector<1x128xf32>
    %c1 = arith.constant 1 : index
    %c0_6 = arith.constant 0 : index
    %5 = vector.load %arg4[%c1, %c0_6] : memref<8x128xf32, #tpu.memory_space<vmem>>, vector<1x128xf32>
    %c2 = arith.constant 2 : index
    %c0_7 = arith.constant 0 : index
    %6 = vector.load %arg4[%c2, %c0_7] : memref<8x128xf32, #tpu.memory_space<vmem>>, vector<1x128xf32>
    %c3 = arith.constant 3 : index
    %c0_8 = arith.constant 0 : index
    %7 = vector.load %arg4[%c3, %c0_8] : memref<8x128xf32, #tpu.memory_space<vmem>>, vector<1x128xf32>
    %c0_9 = arith.constant 0 : index
    %c0_10 = arith.constant 0 : index
    %c0_11 = arith.constant 0 : index
    %8 = vector.load %arg2[%c0_9, %c0_10, %c0_11] : memref<2x10x32xbf16, #tpu.memory_space<vmem>>, vector<2x10x32xbf16>
    %9 = vector.extract_strided_slice %8 {offsets = [0, 0, 0], sizes = [2, 8, 32], strides = [1, 1, 1]} : vector<2x10x32xbf16> to vector<2x8x32xbf16>
    %10 = vector.extract_strided_slice %8 {offsets = [0, 1, 0], sizes = [2, 8, 32], strides = [1, 1, 1]} : vector<2x10x32xbf16> to vector<2x8x32xbf16>
    %11 = vector.extract_strided_slice %8 {offsets = [0, 2, 0], sizes = [2, 8, 32], strides = [1, 1, 1]} : vector<2x10x32xbf16> to vector<2x8x32xbf16>
    %12 = tpu.concatenate %9, %10, %11 in 2 : vector<2x8x32xbf16>, vector<2x8x32xbf16>, vector<2x8x32xbf16> -> vector<2x8x96xbf16>
    %13 = vector.shape_cast %12 : vector<2x8x96xbf16> to vector<16x96xbf16>
    %cst = arith.constant dense<0.000000e+00> : vector<16x128xf32>
    %14 = tpu.matmul %13, %0, %cst {dimension_numbers = #tpu.dot_dimension_numbers<[1], [0], [0], [1], [0, 0, 1, 1], [], []>} : vector<16x96xbf16>, vector<96x128xbf16>, vector<16x128xf32> -> vector<16x128xf32>
    %15 = vector.broadcast %4 : vector<1x128xf32> to vector<16x128xf32>
    %16 = arith.addf %14, %15 : vector<16x128xf32>
    %cst_12 = arith.constant 0.000000e+00 : f32
    %17 = vector.broadcast %cst_12 : f32 to vector<16x128xf32>
    %18 = arith.maximumf %16, %17 : vector<16x128xf32>
    %19 = vector.shape_cast %18 : vector<16x128xf32> to vector<2x8x128xf32>
    %cst_13 = arith.constant dense<0xFF800000> : vector<2x128xf32>
    %20 = vector.multi_reduction <maximumf>, %19, %cst_13 [1] : vector<2x8x128xf32> to vector<2x128xf32>
    %21 = arith.truncf %20 : vector<2x128xf32> to vector<2x128xbf16>
    %cst_14 = arith.constant dense<0.000000e+00> : vector<2x128xf32>
    %22 = tpu.matmul %21, %2, %cst_14 {dimension_numbers = #tpu.dot_dimension_numbers<[1], [0], [0], [1], [0, 0, 1, 1], [], []>} : vector<2x128xbf16>, vector<128x128xbf16>, vector<2x128xf32> -> vector<2x128xf32>
    %23 = vector.broadcast %5 : vector<1x128xf32> to vector<2x128xf32>
    %24 = arith.addf %22, %23 : vector<2x128xf32>
    %c0_15 = arith.constant 0 : index
    %c0_16 = arith.constant 0 : index
    %c0_17 = arith.constant 0 : index
    %25 = vector.load %arg1[%c0_15, %c0_16, %c0_17] : memref<2x20x32xbf16, #tpu.memory_space<vmem>>, vector<2x20x32xbf16>
    %26 = vector.extract_strided_slice %25 {offsets = [0, 0, 0], sizes = [2, 16, 32], strides = [1, 1, 1]} : vector<2x20x32xbf16> to vector<2x16x32xbf16>
    %27 = vector.extract_strided_slice %25 {offsets = [0, 1, 0], sizes = [2, 16, 32], strides = [1, 1, 1]} : vector<2x20x32xbf16> to vector<2x16x32xbf16>
    %28 = vector.extract_strided_slice %25 {offsets = [0, 2, 0], sizes = [2, 16, 32], strides = [1, 1, 1]} : vector<2x20x32xbf16> to vector<2x16x32xbf16>
    %29 = vector.extract_strided_slice %25 {offsets = [0, 3, 0], sizes = [2, 16, 32], strides = [1, 1, 1]} : vector<2x20x32xbf16> to vector<2x16x32xbf16>
    %30 = vector.extract_strided_slice %25 {offsets = [0, 4, 0], sizes = [2, 16, 32], strides = [1, 1, 1]} : vector<2x20x32xbf16> to vector<2x16x32xbf16>
    %31 = tpu.concatenate %26, %27, %28, %29, %30 in 2 : vector<2x16x32xbf16>, vector<2x16x32xbf16>, vector<2x16x32xbf16>, vector<2x16x32xbf16>, vector<2x16x32xbf16> -> vector<2x16x160xbf16>
    %32 = vector.shape_cast %31 : vector<2x16x160xbf16> to vector<32x160xbf16>
    %cst_18 = arith.constant dense<0.000000e+00> : vector<32x128xf32>
    %33 = tpu.matmul %32, %1, %cst_18 {dimension_numbers = #tpu.dot_dimension_numbers<[1], [0], [0], [1], [0, 0, 1, 1], [], []>} : vector<32x160xbf16>, vector<160x128xbf16>, vector<32x128xf32> -> vector<32x128xf32>
    %34 = vector.broadcast %6 : vector<1x128xf32> to vector<32x128xf32>
    %35 = arith.addf %33, %34 : vector<32x128xf32>
    %36 = vector.shape_cast %35 : vector<32x128xf32> to vector<2x16x128xf32>
    %37 = vector.shape_cast %24 : vector<2x128xf32> to vector<2x1x128xf32>
    %38 = vector.broadcast %37 : vector<2x1x128xf32> to vector<2x16x128xf32>
    %39 = arith.addf %36, %38 : vector<2x16x128xf32>
    %40 = vector.extract_strided_slice %39 {offsets = [0, 0, 0], sizes = [2, 16, 64], strides = [1, 1, 1]} : vector<2x16x128xf32> to vector<2x16x64xf32>
    %41 = math.tanh %40 : vector<2x16x64xf32>
    %42 = vector.extract_strided_slice %39 {offsets = [0, 0, 64], sizes = [2, 16, 64], strides = [1, 1, 1]} : vector<2x16x128xf32> to vector<2x16x64xf32>
    %cst_19 = arith.constant 0.000000e+00 : f32
    %43 = vector.broadcast %cst_19 : f32 to vector<2x16x64xf32>
    %44 = arith.maximumf %42, %43 : vector<2x16x64xf32>
    %45 = arith.mulf %41, %44 : vector<2x16x64xf32>
    %c0_20 = arith.constant 0 : index
    %c0_21 = arith.constant 0 : index
    %46 = vector.load %arg5[%c0_20, %c0_21] : memref<16x64xf32, #tpu.memory_space<vmem>>, vector<16x64xf32>
    %47 = vector.shape_cast %46 : vector<16x64xf32> to vector<1x16x64xf32>
    %48 = vector.broadcast %47 : vector<1x16x64xf32> to vector<2x16x64xf32>
    %49 = arith.addf %45, %48 : vector<2x16x64xf32>
    %cst_22 = arith.constant dense<0xFF800000> : vector<2x64xf32>
    %50 = vector.multi_reduction <maximumf>, %49, %cst_22 [1] : vector<2x16x64xf32> to vector<2x64xf32>
    %51 = arith.truncf %50 : vector<2x64xf32> to vector<2x64xbf16>
    %cst_23 = arith.constant dense<0.000000e+00> : vector<2x128xf32>
    %52 = tpu.matmul %51, %3, %cst_23 {dimension_numbers = #tpu.dot_dimension_numbers<[1], [0], [0], [1], [0, 0, 1, 1], [], []>} : vector<2x64xbf16>, vector<64x128xbf16>, vector<2x128xf32> -> vector<2x128xf32>
    %53 = vector.broadcast %7 : vector<1x128xf32> to vector<2x128xf32>
    %54 = arith.addf %52, %53 : vector<2x128xf32>
    %c0_24 = arith.constant 0 : index
    %c0_25 = arith.constant 0 : index
    %55 = vector.load %arg6[%c0_24, %c0_25] : memref<2x128xf32, #tpu.memory_space<vmem>>, vector<2x128xf32>
    tpu.vector_store %arg6[%c0_24, %c0_25], %54 {strides = array<i32>} : memref<2x128xf32, #tpu.memory_space<vmem>>, vector<2x128xf32>,
    return
  }
  func.func @transform_0(%arg0: i32) -> (i32, i32, i32) {
    %c0_i32 = arith.constant 0 : i32
    %c0_i32_0 = arith.constant 0 : i32
    %c0_i32_1 = arith.constant 0 : i32
    return %arg0, %c0_i32, %c0_i32_0 : i32, i32, i32
  }
  func.func @transform_1(%arg0: i32) -> (i32, i32, i32) {
    %c0_i32 = arith.constant 0 : i32
    %c0_i32_0 = arith.constant 0 : i32
    %c0_i32_1 = arith.constant 0 : i32
    return %arg0, %c0_i32, %c0_i32_0 : i32, i32, i32
  }
  func.func @transform_2(%arg0: i32) -> (i32, i32) {
    %c0_i32 = arith.constant 0 : i32
    %c0_i32_0 = arith.constant 0 : i32
    %c0_i32_1 = arith.constant 0 : i32
    return %c0_i32, %c0_i32_0 : i32, i32
  }
  func.func @transform_3(%arg0: i32) -> (i32, i32) {
    %c0_i32 = arith.constant 0 : i32
    %c0_i32_0 = arith.constant 0 : i32
    %c0_i32_1 = arith.constant 0 : i32
    return %c0_i32, %c0_i32_0 : i32, i32
  }
  func.func @transform_4(%arg0: i32) -> (i32, i32) {
    %c0_i32 = arith.constant 0 : i32
    %c0_i32_0 = arith.constant 0 : i32
    %c0_i32_1 = arith.constant 0 : i32
    return %c0_i32, %c0_i32_0 : i32, i32
  }
  func.func @transform_5(%arg0: i32) -> (i32, i32) {
    %c0_i32 = arith.constant 0 : i32
    %c0_i32_0 = arith.constant 0 : i32
    return %arg0, %c0_i32 : i32, i32
  }
}

</mosaic_0001>

<llo_original>
// kernel: tile.14
$region0: #{tile.14}
  #allocation0 [shape = 's32[1]{0}', space=sflag, size = 0x4, scoped, tag = 'scoped memory for tile.14']
  %s0 = inlined_call_operand.vmem [shape: f32[16], index: 0, kind: input, shape index: {}]
  %s1 = inlined_call_operand.vmem [shape: f32[3,16], index: 1, kind: output, shape index: {}]
  // Predicated region
  $region2: #{tile.14} parent=0 // pred_check
    _
  $region3: #{tile.14} parent=0 // pred_check_branch
    %3 = sbr.rel (0) target = $region5
  $region4: #{tile.14} parent=0 // pred_region
    _
  $region5: #{tile.14} parent=0 // pred_fallthru
    _
  %v4 = vld [vmem:[%s0] ss:$0 sm:$0xff]
  %5 = vst [vmem:[%s1] sm:$0xf] %v4

// kernel: _lambda_.1
$region0: #{_lambda_.1}
  #allocation0 [shape = 'u32[]', space=smem, size = 0x4, offset = 0x4, fixed_abs, tag = 'smem constant byte address 0x4 - core index']
  #allocation1 [shape = 'u32[144,128]{1,0:T(1,128)}', space=vmem, size = 0x12000, scoped, tag = 'internal scratch']
  %s0 = inlined_call_operand.vmem [shape: bf16[2,20,32], index: 0, kind: input, shape index: {}]
  %s1 = inlined_call_operand.vmem [shape: bf16[2,10,32], index: 1, kind: input, shape index: {}]
  %s2 = inlined_call_operand.vmem [shape: bf16[448,128], index: 2, kind: input, shape index: {}]
  %s3 = inlined_call_operand.vmem [shape: f32[8,128], index: 3, kind: input, shape index: {}]
  %s4 = inlined_call_operand.vmem [shape: f32[16,64], index: 4, kind: input, shape index: {}]
  %s5 = inlined_call_operand.hbm [shape: f32[2,128], index: 5, kind: output, shape index: {}]
  %s6 = sld [smem:[#allocation0]]
  $region30: #{_lambda_.1} parent=0
    _
  %s8 = ssub.s32 1, %s6
  %s9 = scalar_select 0, %s8, %s6
  $region1: #{_lambda_.1} parent=0
    #allocation2 [shape = 'u8[1024]{0}', space=vmem, size = 0x400, scoped, tag = 'output window, operand 0, single buffered']
    #allocation3 [shape = 's32[1]{0}', space=sflag, size = 0x4, scoped, tag = 'scoped memory for _lambda_.1']
    %10 = vsyncpa [#allocation3], 0
    // Predicated region
    $region2: #{_lambda_.1} parent=1 // pred_check
      _
    $region3: #{_lambda_.1} parent=1 // pred_check_branch
      %12 = sbr.rel (0) target = $region5
    $region4: #{_lambda_.1} parent=1 // pred_region
      _
    $region5: #{_lambda_.1} parent=1 // pred_fallthru
      _
    // Predicated region
    $region6: #{_lambda_.1} parent=1 // pred_check
      _
    $region7: #{_lambda_.1} parent=1 // pred_check_branch
      %14 = sbr.rel (0) target = $region9
    $region8: #{_lambda_.1} parent=1 // pred_region
      _
    $region9: #{_lambda_.1} parent=1 // pred_fallthru
      _
    // Predicated region
    $region10: #{_lambda_.1} parent=1 // pred_check
      _
    $region11: #{_lambda_.1} parent=1 // pred_check_branch
      %16 = sbr.rel (0) target = $region13
    $region12: #{_lambda_.1} parent=1 // pred_region
      _
    $region13: #{_lambda_.1} parent=1 // pred_fallthru
      _
    // Predicated region
    $region14: #{_lambda_.1} parent=1 // pred_check
      _
    $region15: #{_lambda_.1} parent=1 // pred_check_branch
      %18 = sbr.rel (0) target = $region17
    $region16: #{_lambda_.1} parent=1 // pred_region
      _
    $region17: #{_lambda_.1} parent=1 // pred_fallthru
      _
    // Predicated region
    $region18: #{_lambda_.1} parent=1 // pred_check
      _
    $region19: #{_lambda_.1} parent=1 // pred_check_branch
      %20 = sbr.rel (0) target = $region21
    $region20: #{_lambda_.1} parent=1 // pred_region
      _
    $region21: #{_lambda_.1} parent=1 // pred_fallthru
      _
    %v22 = vld [vmem:[%s2] sm:$0xf]
    %v23 = vld [vmem:[%s2 + $0x4] sm:$0xf]
    %v24 = vld [vmem:[%s2 + $0x8] sm:$0xf]
    %v25 = vld [vmem:[%s2 + $0xc] sm:$0xf]
    %v26 = vld [vmem:[%s2 + $0x10] sm:$0xf]
    %v27 = vld [vmem:[%s2 + $0x14] sm:$0xf]
    %v28 = vld [vmem:[%s2 + $0x18] sm:$0xf]
    %v29 = vld [vmem:[%s2 + $0x1c] sm:$0xf]
    %v30 = vld [vmem:[%s2 + $0x20] sm:$0xf]
    %v31 = vld [vmem:[%s2 + $0x24] sm:$0xf]
    %v32 = vld [vmem:[%s2 + $0x28] sm:$0xf]
    %v33 = vld [vmem:[%s2 + $0x2c] sm:$0xf]
    %v34 = vld [vmem:[%s2 + $0x30] sm:$0xf]
    %v35 = vld [vmem:[%s2 + $0x34] sm:$0xf]
    %v36 = vld [vmem:[%s2 + $0x38] sm:$0xf]
    %v37 = vld [vmem:[%s2 + $0x3c] sm:$0xf]
    %v38 = vld [vmem:[%s2 + $0x40] sm:$0xf]
    %v39 = vld [vmem:[%s2 + $0x44] sm:$0xf]
    %v40 = vld [vmem:[%s2 + $0x48] sm:$0xf]
    %v41 = vld [vmem:[%s2 + $0x4c] sm:$0xf]
    %v42 = vld [vmem:[%s2 + $0x50] sm:$0xf]
    %v43 = vld [vmem:[%s2 + $0x54] sm:$0xf]
    %v44 = vld [vmem:[%s2 + $0x58] sm:$0xf]
    %v45 = vld [vmem:[%s2 + $0x5c] sm:$0xf]
    %v46 = vld [vmem:[%s2 + $0x60] sm:$0xf]
    %v47 = vld [vmem:[%s2 + $0x64] sm:$0xf]
    %v48 = vld [vmem:[%s2 + $0x68] sm:$0xf]
    %v49 = vld [vmem:[%s2 + $0x6c] sm:$0xf]
    %v50 = vld [vmem:[%s2 + $0x70] sm:$0xf]
    %v51 = vld [vmem:[%s2 + $0x74] sm:$0xf]
    %v52 = vld [vmem:[%s2 + $0x78] sm:$0xf]
    %v53 = vld [vmem:[%s2 + $0x7c] sm:$0xf]
    %v54 = vld [vmem:[%s2 + $0x80] sm:$0xf]
    %v55 = vld [vmem:[%s2 + $0x84] sm:$0xf]
    %v56 = vld [vmem:[%s2 + $0x88] sm:$0xf]
    %v57 = vld [vmem:[%s2 + $0x8c] sm:$0xf]
    %v58 = vld [vmem:[%s2 + $0x90] sm:$0xf]
    %v59 = vld [vmem:[%s2 + $0x94] sm:$0xf]
    %v60 = vld [vmem:[%s2 + $0x98] sm:$0xf]
    %v61 = vld [vmem:[%s2 + $0x9c] sm:$0xf]
    %v62 = vld [vmem:[%s2 + $0xa0] sm:$0xf]
    %v63 = vld [vmem:[%s2 + $0xa4] sm:$0xf]
    %v64 = vld [vmem:[%s2 + $0xa8] sm:$0xf]
    %v65 = vld [vmem:[%s2 + $0xac] sm:$0xf]
    %v66 = vld [vmem:[%s2 + $0xb0] sm:$0xf]
    %v67 = vld [vmem:[%s2 + $0xb4] sm:$0xf]
    %v68 = vld [vmem:[%s2 + $0xb8] sm:$0xf]
    %v69 = vld [vmem:[%s2 + $0xbc] sm:$0xf]
    %v70 = vld [vmem:[%s2 + $0xc0] sm:$0xf]
    %v71 = vld [vmem:[%s2 + $0xc4] sm:$0xf]
    %v72 = vld [vmem:[%s2 + $0xc8] sm:$0xf]
    %v73 = vld [vmem:[%s2 + $0xcc] sm:$0xf]
    %v74 = vld [vmem:[%s2 + $0xd0] sm:$0xf]
    %v75 = vld [vmem:[%s2 + $0xd4] sm:$0xf]
    %v76 = vld [vmem:[%s2 + $0xd8] sm:$0xf]
    %v77 = vld [vmem:[%s2 + $0xdc] sm:$0xf]
    %v78 = vld [vmem:[%s3] sm:$0x1]
    %v79 = vld [vmem:[%s3 + $0x1] sm:$0x1]
    %v80 = vld [vmem:[%s3 + $0x2] sm:$0x1]
    %v81 = vld [vmem:[%s3 + $0x3] sm:$0x1]
    %v82 = vld [vmem:[%s1] sm:$0xf]
    %v83 = vld [vmem:[%s1 + $0x4] sm:$0x1]
    %v84 = vld [vmem:[%s1 + $0x8] sm:$0xf]
    %v85 = vld [vmem:[%s1 + $0xc] sm:$0x1]
    %v90 = vunpack.c.l.b16 %v82
    %v91 = vunpack.c.l.b16 %v83
    %v92 = vunpack.c.l.b16 %v84
    %v93 = vunpack.c.l.b16 %v85
    %v94 = vpack.c.b16 %v91, %v90
    %v95 = vpack.c.b16 %v93, %v92
    %v97 = vshrl.u32 %v94, 16
    %v99 = vshll.u32 %v94, 16
    %v101 = vrot.slane %v99, 1
    %v102 = vor.u32 %v97, %v101
    %v104 = vshrl.u32 %v95, 16
    %v106 = vshll.u32 %v95, 16
    %v108 = vrot.slane %v106, 1
    %v109 = vor.u32 %v104, %v108
    %110 = vrot.lane.b32.xlu0 %v102, 32
    %v111 = vpop.permute.xlu0 %110
    %112 = vrot.lane.b32.xlu0 %v109, 32
    %v113 = vpop.permute.xlu0 %112
    %v114 = vrot.slane %v94, 1
    %v115 = vrot.slane %v95, 1
    %116 = vrot.lane.b32.xlu0 %v114, 64
    %v117 = vpop.permute.xlu0 %116
    %118 = vrot.lane.b32.xlu0 %v115, 64
    %v119 = vpop.permute.xlu0 %118
    %vm120 = vcmask 261120
    %v123 = vsel %vm120, %v82, %v111
    %v126 = vsel %vm120, %v84, %v113
    %vm127 = vcmask 523264
    %v129 = vsel %vm127, %v123, %v117
    %v131 = vsel %vm127, %v126, %v119
    %v132 = vlaneseq
    %v133 = vshrl.u32 %v132, 7
    %v134 = vsub.s32 0, %v133
    %v135 = vrot.slane %v78, %v134
    %v138 = vunpack.c.l.b16 %v129
    %v139 = vunpack.c.l.b16 %v131
    %v140 = vpack.c.b16 %v139, %v138
    %v153 = vunpack.c.l.b16 %v22
    %v154 = vunpack.c.l.b16 %v23
    %v155 = vunpack.c.l.b16 %v24
    %v156 = vunpack.c.l.b16 %v25
    %v157 = vunpack.c.l.b16 %v26
    %v158 = vunpack.c.l.b16 %v27
    %v159 = vunpack.c.l.b16 %v28
    %v160 = vunpack.c.l.b16 %v29
    %v161 = vunpack.c.l.b16 %v30
    %v162 = vunpack.c.l.b16 %v31
    %v163 = vunpack.c.l.b16 %v32
    %v164 = vunpack.c.l.b16 %v33
    %v165 = vpack.c.b16 %v154, %v153
    %v166 = vpack.c.b16 %v156, %v155
    %v167 = vpack.c.b16 %v158, %v157
    %v168 = vpack.c.b16 %v160, %v159
    %v169 = vpack.c.b16 %v162, %v161
    %v170 = vpack.c.b16 %v164, %v163
    %vm177 = vcmask 785408
    %v179 = vsel %vm177, %v140, 0
    %181 = vmatprep.subr.bf16.mxu0 0
    %182 = vmatpush1.bf16.msra.mxu0 %v165
    %183 = vmatprep.subr.bf16.mxu0 0
    %184 = vmatpush1.bf16.msra.mxu0 %v166
    %185 = vmatprep.subr.bf16.mxu0 0
    %186 = vmatpush1.bf16.msra.mxu0 %v167
    %187 = vmatprep.subr.bf16.mxu0 0
    %188 = vmatpush1.bf16.msra.mxu0 %v168
    %189 = vmatprep.subr.bf16.mxu0 0
    %190 = vmatpush1.bf16.msra.mxu0 %v169
    %191 = vmatprep.subr.bf16.mxu0 0
    %192 = vmatpush1.bf16.msra.mxu0 %v170
    %193 = vmatprep.subr.bf16.mxu0 0
    %194 = vmatpush1.bf16.msra.mxu0 0
    %195 = vmatprep.subr.bf16.mxu0 0
    %196 = vmatpush1.bf16.msra.mxu0 0
    %197 = vmatprep.subr.bf16.mxu0 0
    %198 = vmatpush1.bf16.msra.mxu0 0
    %199 = vmatprep.subr.bf16.mxu0 0
    %200 = vmatpush1.bf16.msra.mxu0 0
    %201 = vmatprep.subr.bf16.mxu0 0
    %202 = vmatpush1.bf16.msra.mxu0 0
    %203 = vmatprep.subr.bf16.mxu0 0
    %204 = vmatpush1.bf16.msra.mxu0 0
    %205 = vmatprep.subr.bf16.mxu0 0
    %206 = vmatpush1.bf16.msra.mxu0 0
    %207 = vmatprep.subr.bf16.mxu0 0
    %208 = vmatpush1.bf16.msra.mxu0 0
    %209 = vmatprep.subr.bf16.mxu0 0
    %210 = vmatpush1.bf16.msra.mxu0 0
    %211 = vmatprep.subr.bf16.mxu0 0
    %212 = vmatpush1.bf16.msra.mxu0 0
    %213 = vmatprep.mubr.bf16.mxu0 0
    %214 = vmatmul.mubr.bf16.gmra.mrb[0].mxu0 %v179
    %v215 = vpop.f32.mrb[0].mxu0
    %v216 = vadd.f32 %v135, %v215
    %v217 = vpop.f32.mrb[0].mxu0
    %v218 = vpop.f32.mrb[0].mxu0
    %v219 = vadd.f32 %v135, %v218
    %v220 = vpop.f32.mrb[0].mxu0
    %221 = vdwg.mxu0
    %v222 = vmax.f32 %v216, 0.0
    %v223 = vmax.f32 %v219, 0.0
    %v224 = vrot.slane %v222, 4
    %v225 = vmax.f32 %v222, %v224
    %v226 = vrot.slane %v225, 2
    %v227 = vmax.f32 %v225, %v226
    %v228 = vrot.slane %v227, 1
    %v229 = vmax.f32 %v227, %v228
    %v230 = vrot.slane %v223, 4
    %v231 = vmax.f32 %v223, %v230
    %v232 = vrot.slane %v231, 2
    %v233 = vmax.f32 %v231, %v232
    %v234 = vrot.slane %v233, 1
    %v235 = vmax.f32 %v233, %v234
    %v236 = vpack.c.bf16 %v229, %v229
    %v237 = vpack.c.bf16 %v235, %v235
    %v238 = vlaneseq
    %v239 = vshrl.u32 %v238, 7
    %v240 = vsub.s32 0, %v239
    %v241 = vrot.slane %v79, %v240
    %v244 = vunpack.c.l.b16 %v236
    %v245 = vunpack.c.l.b16 %v237
    %vm246 = vcmask 1041409
    %v247 = vsel %vm246, %v245, %v244
    %v248 = vpack.c.b16 %v247, %v247
    %v266 = vunpack.c.l.b16 %v54
    %v267 = vunpack.c.l.b16 %v55
    %v268 = vunpack.c.l.b16 %v56
    %v269 = vunpack.c.l.b16 %v57
    %v270 = vunpack.c.l.b16 %v58
    %v271 = vunpack.c.l.b16 %v59
    %v272 = vunpack.c.l.b16 %v60
    %v273 = vunpack.c.l.b16 %v61
    %v274 = vunpack.c.l.b16 %v62
    %v275 = vunpack.c.l.b16 %v63
    %v276 = vunpack.c.l.b16 %v64
    %v277 = vunpack.c.l.b16 %v65
    %v278 = vunpack.c.l.b16 %v66
    %v279 = vunpack.c.l.b16 %v67
    %v280 = vunpack.c.l.b16 %v68
    %v281 = vunpack.c.l.b16 %v69
    %v282 = vpack.c.b16 %v267, %v266
    %v283 = vpack.c.b16 %v269, %v268
    %v284 = vpack.c.b16 %v271, %v270
    %v285 = vpack.c.b16 %v273, %v272
    %v286 = vpack.c.b16 %v275, %v274
    %v287 = vpack.c.b16 %v277, %v276
    %v288 = vpack.c.b16 %v279, %v278
    %v289 = vpack.c.b16 %v281, %v280
    %298 = vmatprep.subr.bf16.mxu0 0
    %299 = vmatpush1.bf16.msra.mxu0 %v282
    %300 = vmatprep.subr.bf16.mxu0 0
    %301 = vmatpush1.bf16.msra.mxu0 %v283
    %302 = vmatprep.subr.bf16.mxu0 0
    %303 = vmatpush1.bf16.msra.mxu0 %v284
    %304 = vmatprep.subr.bf16.mxu0 0
    %305 = vmatpush1.bf16.msra.mxu0 %v285
    %306 = vmatprep.subr.bf16.mxu0 0
    %307 = vmatpush1.bf16.msra.mxu0 %v286
    %308 = vmatprep.subr.bf16.mxu0 0
    %309 = vmatpush1.bf16.msra.mxu0 %v287
    %310 = vmatprep.subr.bf16.mxu0 0
    %311 = vmatpush1.bf16.msra.mxu0 %v288
    %312 = vmatprep.subr.bf16.mxu0 0
    %313 = vmatpush1.bf16.msra.mxu0 %v289
    %314 = vmatprep.subr.bf16.mxu0 0
    %315 = vmatpush1.bf16.msra.mxu0 0
    %316 = vmatprep.subr.bf16.mxu0 0
    %317 = vmatpush1.bf16.msra.mxu0 0
    %318 = vmatprep.subr.bf16.mxu0 0
    %319 = vmatpush1.bf16.msra.mxu0 0
    %320 = vmatprep.subr.bf16.mxu0 0
    %321 = vmatpush1.bf16.msra.mxu0 0
    %322 = vmatprep.subr.bf16.mxu0 0
    %323 = vmatpush1.bf16.msra.mxu0 0
    %324 = vmatprep.subr.bf16.mxu0 0
    %325 = vmatpush1.bf16.msra.mxu0 0
    %326 = vmatprep.subr.bf16.mxu0 0
    %327 = vmatpush1.bf16.msra.mxu0 0
    %328 = vmatprep.subr.bf16.mxu0 0
    %329 = vmatpush1.bf16.msra.mxu0 0
    %330 = vmatprep.mubr.bf16.mxu0 0
    %331 = vmatmul.mubr.bf16.gmra.mrb[0].mxu0 %v248
    %v332 = vpop.f32.mrb[0].mxu0
    %v333 = vadd.f32 %v241, %v332
    %v334 = vpop.f32.mrb[0].mxu0
    %v335 = vpop.f32.mrb[0].mxu0
    %v336 = vpop.f32.mrb[0].mxu0
    %337 = vdwg.mxu0
    %v338 = vld [vmem:[%s0] sm:$0xf]
    %v339 = vld [vmem:[%s0 + $0x4] sm:$0xf]
    %v340 = vld [vmem:[%s0 + $0x8] sm:$0x3]
    %v341 = vld [vmem:[%s0 + $0xc] sm:$0xf]
    %v342 = vld [vmem:[%s0 + $0x10] sm:$0xf]
    %v343 = vld [vmem:[%s0 + $0x14] sm:$0x3]
    %v348 = vunpack.c.l.b16 %v338
    %v349 = vunpack.c.l.b16 %v339
    %v350 = vunpack.c.l.b16 %v341
    %v351 = vunpack.c.l.b16 %v342
    %v352 = vpack.c.b16 %v349, %v348
    %v353 = vpack.c.b16 %v351, %v350
    %v356 = vunpack.c.l.b16 %v340
    %v357 = vunpack.c.l.b16 %v343
    %v358 = vpack.c.b16 %v356, %v356
    %v359 = vpack.c.b16 %v357, %v357
    %vm360 = vsmask.f32 7424
    %v362 = vshrl.u32 %v352, 16
    %v364 = vshll.u32 %v352, 16
    %v366 = vrot.slane %v364, 1
    %v367 = vor.u32 %v362, %v366
    %v369 = vshll.u32 %v358, 16
    %v371 = vrot.slane %v369, 1
    %v372 = vsel %vm360, %v367, %v371
    %v374 = vshrl.u32 %v353, 16
    %v376 = vshll.u32 %v353, 16
    %v378 = vrot.slane %v376, 1
    %v379 = vor.u32 %v374, %v378
    %v381 = vshll.u32 %v359, 16
    %v383 = vrot.slane %v381, 1
    %v384 = vsel %vm360, %v379, %v383
    %385 = vrot.lane.b32.xlu0 %v372, 32
    %v386 = vpop.permute.xlu0 %385
    %387 = vrot.lane.b32.xlu0 %v384, 32
    %v388 = vpop.permute.xlu0 %387
    %vm389 = vcmask 1046528
    %v390 = vrot.slane %v352, 1
    %v391 = vrot.slane %v358, 1
    %v392 = vsel %vm389, %v390, %v391
    %v393 = vrot.slane %v353, 1
    %v394 = vrot.slane %v359, 1
    %v395 = vsel %vm389, %v393, %v394
    %396 = vrot.lane.b32.xlu0 %v392, 64
    %v397 = vpop.permute.xlu0 %396
    %398 = vrot.lane.b32.xlu0 %v395, 64
    %v399 = vpop.permute.xlu0 %398
    %vm400 = vsmask.f32 6400
    %v401 = vrot.slane %v362, 1
    %v402 = vrot.slane %v364, 2
    %v403 = vor.u32 %v401, %v402
    %v404 = vshrl.u32 %v358, 16
    %v406 = vrot.slane %v404, 1
    %v407 = vrot.slane %v369, 2
    %v408 = vor.u32 %v406, %v407
    %v409 = vsel %vm400, %v403, %v408
    %v410 = vrot.slane %v374, 1
    %v411 = vrot.slane %v376, 2
    %v412 = vor.u32 %v410, %v411
    %v413 = vshrl.u32 %v359, 16
    %v415 = vrot.slane %v413, 1
    %v416 = vrot.slane %v381, 2
    %v417 = vor.u32 %v415, %v416
    %v418 = vsel %vm400, %v412, %v417
    %419 = vrot.lane.b32.xlu0 %v409, 96
    %v420 = vpop.permute.xlu0 %419
    %421 = vrot.lane.b32.xlu0 %v418, 96
    %v422 = vpop.permute.xlu0 %421
    %vm423 = vcmask 1045504
    %v424 = vrot.slane %v352, 2
    %v425 = vrot.slane %v358, 2
    %v426 = vsel %vm423, %v424, %v425
    %v427 = vrot.slane %v353, 2
    %v428 = vrot.slane %v359, 2
    %v429 = vsel %vm423, %v427, %v428
    %v431 = vsel %vm120, %v352, %v386
    %v433 = vsel %vm120, %v353, %v388
    %v435 = vsel %vm127, %v431, %v397
    %v437 = vsel %vm127, %v433, %v399
    %v439 = vsel %vm177, %v435, %v420
    %v442 = vsel %vm177, %v437, %v422
    %v444 = vlaneseq
    %v445 = vshrl.u32 %v444, 7
    %v446 = vsub.s32 0, %v445
    %v447 = vrot.slane %v80, %v446
    %v468 = vunpack.c.l.b16 %v34
    %v469 = vunpack.c.l.b16 %v35
    %v470 = vunpack.c.l.b16 %v36
    %v471 = vunpack.c.l.b16 %v37
    %v472 = vunpack.c.l.b16 %v38
    %v473 = vunpack.c.l.b16 %v39
    %v474 = vunpack.c.l.b16 %v40
    %v475 = vunpack.c.l.b16 %v41
    %v476 = vunpack.c.l.b16 %v42
    %v477 = vunpack.c.l.b16 %v43
    %v478 = vunpack.c.l.b16 %v44
    %v479 = vunpack.c.l.b16 %v45
    %v480 = vunpack.c.l.b16 %v46
    %v481 = vunpack.c.l.b16 %v47
    %v482 = vunpack.c.l.b16 %v48
    %v483 = vunpack.c.l.b16 %v49
    %v484 = vunpack.c.l.b16 %v50
    %v485 = vunpack.c.l.b16 %v51
    %v486 = vunpack.c.l.b16 %v52
    %v487 = vunpack.c.l.b16 %v53
    %v488 = vpack.c.b16 %v469, %v468
    %v489 = vpack.c.b16 %v471, %v470
    %v490 = vpack.c.b16 %v473, %v472
    %v491 = vpack.c.b16 %v475, %v474
    %v492 = vpack.c.b16 %v477, %v476
    %v493 = vpack.c.b16 %v479, %v478
    %v494 = vpack.c.b16 %v481, %v480
    %v495 = vpack.c.b16 %v483, %v482
    %v496 = vpack.c.b16 %v485, %v484
    %v497 = vpack.c.b16 %v487, %v486
    %v509 = vsel %vm120, %v426, 0
    %v512 = vsel %vm120, %v429, 0
    %514 = vmatprep.subr.bf16.mxu0 0
    %515 = vmatpush1.bf16.msra.mxu0 %v488
    %516 = vmatprep.subr.bf16.mxu0 0
    %517 = vmatpush1.bf16.msra.mxu0 %v489
    %518 = vmatprep.subr.bf16.mxu0 0
    %519 = vmatpush1.bf16.msra.mxu0 %v490
    %520 = vmatprep.subr.bf16.mxu0 0
    %521 = vmatpush1.bf16.msra.mxu0 %v491
    %522 = vmatprep.subr.bf16.mxu0 0
    %523 = vmatpush1.bf16.msra.mxu0 %v492
    %524 = vmatprep.subr.bf16.mxu0 0
    %525 = vmatpush1.bf16.msra.mxu0 %v493
    %526 = vmatprep.subr.bf16.mxu0 0
    %527 = vmatpush1.bf16.msra.mxu0 %v494
    %528 = vmatprep.subr.bf16.mxu0 0
    %529 = vmatpush1.bf16.msra.mxu0 %v495
    %530 = vmatprep.subr.bf16.mxu0 0
    %531 = vmatpush1.bf16.msra.mxu0 %v496
    %532 = vmatprep.subr.bf16.mxu0 0
    %533 = vmatpush1.bf16.msra.mxu0 %v497
    %534 = vmatprep.subr.bf16.mxu0 0
    %535 = vmatpush1.bf16.msra.mxu0 0
    %536 = vmatprep.subr.bf16.mxu0 0
    %537 = vmatpush1.bf16.msra.mxu0 0
    %538 = vmatprep.subr.bf16.mxu0 0
    %539 = vmatpush1.bf16.msra.mxu0 0
    %540 = vmatprep.subr.bf16.mxu0 0
    %541 = vmatpush1.bf16.msra.mxu0 0
    %542 = vmatprep.subr.bf16.mxu0 0
    %543 = vmatpush1.bf16.msra.mxu0 0
    %544 = vmatprep.subr.bf16.mxu0 0
    %545 = vmatpush1.bf16.msra.mxu0 0
    %546 = vmatprep.mubr.bf16.mxu0 %v509
    %547 = vmatmul.mubr.bf16.gmra.mrb[0].mxu0 %v439
    %v548 = vpop.f32.mrb[0].mxu0
    %v549 = vadd.f32 %v447, %v548
    %v550 = vpop.f32.mrb[0].mxu0
    %v551 = vpop.f32.mrb[0].mxu0
    %v552 = vadd.f32 %v447, %v551
    %v553 = vpop.f32.mrb[0].mxu0
    %554 = vmatprep.mubr.bf16.mxu0 %v512
    %555 = vmatmul.mubr.bf16.gmra.mrb[0].mxu0 %v442
    %v556 = vpop.f32.mrb[0].mxu0
    %v557 = vadd.f32 %v447, %v556
    %v558 = vpop.f32.mrb[0].mxu0
    %v559 = vpop.f32.mrb[0].mxu0
    %v560 = vadd.f32 %v447, %v559
    %v561 = vpop.f32.mrb[0].mxu0
    %562 = vdwg.mxu0
    %v565 = vunpack.c.l.s4 1966171168
    %v566 = vunpack.c.0.s8 %v565
    %v567 = vlaneseq
    %v568 = vshrl.u32 %v567, 7
    %v569 = vsub.s32 %v566, %v568
    %v570 = vrot.slane %v333, %v569
    %v571 = vcombine.high %v570, %v570
    %v573 = vunpack.c.l.s4 1966171168
    %v574 = vunpack.c.0.s8 %v573
    %v575 = vlaneseq
    %v576 = vshrl.u32 %v575, 7
    %v577 = vsub.s32 %v574, %v576
    %v578 = vrot.slane %v570, %v577
    %v580 = vunpack.c.l.s4 1966171168
    %v581 = vunpack.c.0.s8 %v580
    %v582 = vlaneseq
    %v583 = vshrl.u32 %v582, 7
    %v584 = vsub.s32 %v581, %v583
    %v585 = vrot.slane %v571, %v584
    %v586 = vlaneseq
    %v587 = vshrl.u32 %v586, 7
    %v588 = vsub.s32 0, %v587
    %v589 = vrot.slane %v578, %v588
    %v590 = vlaneseq
    %v591 = vshrl.u32 %v590, 7
    %v592 = vsub.s32 0, %v591
    %v593 = vrot.slane %v585, %v592
    %v596 = vadd.f32 %v549, %v589
    %v597 = vadd.f32 %v552, %v589
    %v598 = vadd.f32 %v557, %v593
    %v599 = vadd.f32 %v560, %v593
    %v600 = vtanh.pop %v596
    %v601 = vtanh.pop %v597
    %v602 = vtanh.pop %v598
    %v603 = vtanh.pop %v599
    %v604 = vmax.f32 %v596, 0.0
    %v605 = vmax.f32 %v597, 0.0
    %v606 = vmax.f32 %v598, 0.0
    %v607 = vmax.f32 %v599, 0.0
    %612 = vrot.lane.b32.xlu0 %v604, 64
    %v613 = vpop.permute.xlu0 %612
    %614 = vrot.lane.b32.xlu0 %v605, 64
    %v615 = vpop.permute.xlu0 %614
    %616 = vrot.lane.b32.xlu0 %v606, 64
    %v617 = vpop.permute.xlu0 %616
    %618 = vrot.lane.b32.xlu0 %v607, 64
    %v619 = vpop.permute.xlu0 %618
    %v624 = vmul.f32 %v600, %v613
    %v625 = vmul.f32 %v601, %v615
    %v626 = vmul.f32 %v602, %v617
    %v627 = vmul.f32 %v603, %v619
    %v628 = vld [vmem:[%s4] sm:$0xff]
    %v629 = vld [vmem:[%s4 + $0x8] sm:$0xff]
    %v630 = vadd.f32 %v624, %v628
    %v631 = vadd.f32 %v625, %v629
    %v632 = vadd.f32 %v626, %v628
    %v633 = vadd.f32 %v627, %v629
    %v634 = vsel %vm127, %v630, -inf
    %v635 = vsel %vm127, %v631, -inf
    %v636 = vmax.f32 %v634, %v635
    %v637 = vrot.slane %v636, 4
    %v638 = vmax.f32 %v636, %v637
    %v639 = vrot.slane %v638, 2
    %v640 = vmax.f32 %v638, %v639
    %v641 = vrot.slane %v640, 1
    %v642 = vmax.f32 %v640, %v641
    %v643 = vsel %vm127, %v632, -inf
    %v644 = vsel %vm127, %v633, -inf
    %v645 = vmax.f32 %v643, %v644
    %v646 = vrot.slane %v645, 4
    %v647 = vmax.f32 %v645, %v646
    %v648 = vrot.slane %v647, 2
    %v649 = vmax.f32 %v647, %v648
    %v650 = vrot.slane %v649, 1
    %v651 = vmax.f32 %v649, %v650
    %v652 = vpack.c.bf16 %v642, %v642
    %v653 = vpack.c.bf16 %v651, %v651
    %v654 = vlaneseq
    %v655 = vshrl.u32 %v654, 7
    %v656 = vsub.s32 0, %v655
    %v657 = vrot.slane %v81, %v656
    %v660 = vunpack.c.l.b16 %v652
    %v661 = vunpack.c.l.b16 %v653
    %v662 = vsel %vm246, %v661, %v660
    %v663 = vpack.c.b16 %v662, %v662
    %v672 = vunpack.c.l.b16 %v70
    %v673 = vunpack.c.l.b16 %v71
    %v674 = vunpack.c.l.b16 %v72
    %v675 = vunpack.c.l.b16 %v73
    %v676 = vunpack.c.l.b16 %v74
    %v677 = vunpack.c.l.b16 %v75
    %v678 = vunpack.c.l.b16 %v76
    %v679 = vunpack.c.l.b16 %v77
    %v680 = vpack.c.b16 %v673, %v672
    %v681 = vpack.c.b16 %v675, %v674
    %v682 = vpack.c.b16 %v677, %v676
    %v683 = vpack.c.b16 %v679, %v678
    %v689 = vsel %vm127, %v663, 0
    %691 = vmatprep.subr.bf16.mxu0 0
    %692 = vmatpush1.bf16.msra.mxu0 %v680
    %693 = vmatprep.subr.bf16.mxu0 0
    %694 = vmatpush1.bf16.msra.mxu0 %v681
    %695 = vmatprep.subr.bf16.mxu0 0
    %696 = vmatpush1.bf16.msra.mxu0 %v682
    %697 = vmatprep.subr.bf16.mxu0 0
    %698 = vmatpush1.bf16.msra.mxu0 %v683
    %699 = vmatprep.subr.bf16.mxu0 0
    %700 = vmatpush1.bf16.msra.mxu0 0
    %701 = vmatprep.subr.bf16.mxu0 0
    %702 = vmatpush1.bf16.msra.mxu0 0
    %703 = vmatprep.subr.bf16.mxu0 0
    %704 = vmatpush1.bf16.msra.mxu0 0
    %705 = vmatprep.subr.bf16.mxu0 0
    %706 = vmatpush1.bf16.msra.mxu0 0
    %707 = vmatprep.subr.bf16.mxu0 0
    %708 = vmatpush1.bf16.msra.mxu0 0
    %709 = vmatprep.subr.bf16.mxu0 0
    %710 = vmatpush1.bf16.msra.mxu0 0
    %711 = vmatprep.subr.bf16.mxu0 0
    %712 = vmatpush1.bf16.msra.mxu0 0
    %713 = vmatprep.subr.bf16.mxu0 0
    %714 = vmatpush1.bf16.msra.mxu0 0
    %715 = vmatprep.subr.bf16.mxu0 0
    %716 = vmatpush1.bf16.msra.mxu0 0
    %717 = vmatprep.subr.bf16.mxu0 0
    %718 = vmatpush1.bf16.msra.mxu0 0
    %719 = vmatprep.subr.bf16.mxu0 0
    %720 = vmatpush1.bf16.msra.mxu0 0
    %721 = vmatprep.subr.bf16.mxu0 0
    %722 = vmatpush1.bf16.msra.mxu0 0
    %723 = vmatprep.mubr.bf16.mxu0 0
    %724 = vmatmul.mubr.bf16.gmra.mrb[0].mxu0 %v689
    %v725 = vpop.f32.mrb[0].mxu0
    %v726 = vadd.f32 %v657, %v725
    %v727 = vpop.f32.mrb[0].mxu0
    %v728 = vpop.f32.mrb[0].mxu0
    %v729 = vpop.f32.mrb[0].mxu0
    %730 = vdwg.mxu0
    %731 = vst [vmem:[#allocation2] sm:$0x3] %v726
    // Predicated region
    $region22: #{_lambda_.1} parent=1 // pred_check
      _
    $region23: #{_lambda_.1} parent=1 // pred_check_branch
      %733 = sbr.rel (0) target = $region25
    $region24: #{_lambda_.1} parent=1 // pred_region
      %s735 = ssub.s32 32, 32
      %736 = vsyncadd [#allocation3], %s735
      %s738 = sshll.u32 [#allocation2], 4
      %s739 = int_to_ptr.vmem [resolvable:$true] %s738
      %741 = dma.vmem_to_hbm [thread:$0]  %s739, 32, %s5, [#allocation3]
    $region25: #{_lambda_.1} parent=1 // pred_fallthru
      _
    // Predicated region
    $region26: #{_lambda_.1} parent=1 // pred_check
      _
    $region27: #{_lambda_.1} parent=1 // pred_check_branch
      %743 = sbr.rel (0) target = $region29
    $region28: #{_lambda_.1} parent=1 // pred_region
      %744 = dma.done [#allocation3], 32
    $region29: #{_lambda_.1} parent=1 // pred_fallthru
      _
    %745 = vsyncpa [#allocation3], 1

</llo_original>
